<compile_context>
chip_gen: v7x
topology: tpu7x:2x2x1
jax: 0.10.0
libtpu: 0.0.40
codegen_flags: <defaults>
</compile_context>

<pallas_src>
import math

import jax
import jax.numpy as jnp
from jax.experimental import pallas as pl
from jax.experimental.pallas import tpu as pltpu

LANE = 128
TS_MAX = 512  # row-tile cap: 512 x 128 lanes/channel; ~4 MiB dbl-buffered (f32, C=4)


def cfg_kernel(w_ref, bias_ref, x_ref, out_ref):
    """out[0, co] = sum_ci W[b, ci, co] * x[0, ci] + bias[b, co]   (f32 accumulate).

    w_ref:    SMEM (B*C*C,) f32 -- folded per-batch affine, row-major [b, ci, co]
    bias_ref: SMEM (B*C,)   f32 -- folded per-batch bias
    x_ref:    VMEM (1, C, TS, 128)  native dtype
    out_ref:  VMEM (1, C, TS, 128)  native dtype
    """
    b = pl.program_id(0)
    C = x_ref.shape[1]
    for co in range(C):                       # static unroll: C*C scalar-bcast FMAs
        acc = x_ref[0, 0].astype(jnp.float32) * w_ref[b * C * C + co]
        for ci in range(1, C):
            acc = acc + x_ref[0, ci].astype(jnp.float32) * w_ref[b * C * C + ci * C + co]
        # store each channel slab as it is produced: lane-dense (TS, 128) vst
        out_ref[0, co] = (acc + bias_ref[b * C + co]).astype(out_ref.dtype)


def cfg_noise_predictor(x_nchw, sigma, ctx_cond, ctx_uncond, cond_scale, params,
                        model_options=None):
    """Wrapper == CFGNoisePredictor.forward(x, timestep, cond, uncond, cond_scale)."""
    model_options = model_options or {}
    B, C, H, W = x_nchw.shape
    HW = H * W
    in_dtype = x_nchw.dtype

    # ---- per-batch scalar folding (once per call, in f32, outside the kernel) ----
    sig = sigma.reshape(B, 1).astype(jnp.float32)            # (B, 1)
    denom = jnp.float32(1.0) + jnp.float32(1e-37)            # area/mult bookkeeping
    rsq = jax.lax.rsqrt(sig * sig + 1.0)                     # calculate_input scale

    w_conv = params["w_conv"].astype(jnp.float32)            # (C, C)  [ci, co]
    b_conv = params["b_conv"].astype(jnp.float32).reshape(1, C)
    w_ctx = params["w_ctx"].astype(jnp.float32)              # (Dctx, C)
    b_ctx = params["b_ctx"].astype(jnp.float32).reshape(1, C)
    w_t = params["w_t"].astype(jnp.float32).reshape(1, C)

    ctx_c_mean = jnp.mean(ctx_cond.astype(jnp.float32), axis=1)    # (B, Dctx)
    ctx_u_mean = jnp.mean(ctx_uncond.astype(jnp.float32), axis=1)
    bias_c = ctx_c_mean @ w_ctx + b_ctx + sig * w_t + b_conv       # (B, C)
    bias_u = ctx_u_mean @ w_ctx + b_ctx + sig * w_t + b_conv       # (B, C)

    # cfg==1 optimization from sampling_function: only when cond_scale is a
    # Python number (trace-time specialization; traced scales take the general path).
    static_scale = isinstance(cond_scale, (int, float))
    skip_uncond = (static_scale and math.isclose(float(cond_scale), 1.0)
                   and not model_options.get("disable_cfg1_optimization", False))
    cs = jnp.float32(cond_scale)

    if skip_uncond:
        # out = cond_scale * (x - sigma * eps_cond) / denom   (uncond_pred == 0)
        alpha = cs / denom
        wscale = -(cs * sig * rsq) / denom                    # (B, 1)
        bias_full = -(cs * sig / denom) * bias_c              # (B, C)
    else:
        # out = (x - sigma * (eps_u + cs*(eps_c - eps_u))) / denom
        alpha = jnp.float32(1.0) / denom
        wscale = -(sig * rsq) / denom                         # (B, 1)
        bias_full = -(sig / denom) * (bias_u + cs * (bias_c - bias_u))

    # Fold x pass-through + 1x1 conv into one per-batch (C, C) weight, flat in SMEM.
    eye = jnp.eye(C, dtype=jnp.float32)
    w_full = alpha * eye[None] + wscale[:, :, None] * w_conv[None]     # (B, C, C)
    w_flat = w_full.reshape(B * C * C)                        # 1D SMEM (no pad blowup)
    bias_flat = bias_full.reshape(B * C)

    # ---- layout: spatial fills the LAST TWO dims; native dtype end-to-end ----
    x = x_nchw.reshape(B, C, HW)                              # free reshape, no cast
    pad = (-HW) % LANE
    if pad:
        # TODO(synk): irregular spatial sizes need a pad pass (extra HBM traffic).
        x = jnp.pad(x, ((0, 0), (0, 0), (0, pad)))
    rows = (HW + pad) // LANE
    x = x.reshape(B, C, rows, LANE)

    ts = rows if rows <= TS_MAX else TS_MAX                   # full dim or mult of 8
    grid_rows = pl.cdiv(rows, ts)
    if B * grid_rows < 2 and rows >= 16:
        # v7x: make sure both TensorCores get at least one block each.
        ts = ((rows + 1) // 2 + 7) // 8 * 8
        grid_rows = pl.cdiv(rows, ts)

    smem = pl.BlockSpec(memory_space=pltpu.MemorySpace.SMEM)
    out = pl.pallas_call(
        cfg_kernel,
        out_shape=jax.ShapeDtypeStruct((B, C, rows, LANE), in_dtype),
        grid=(B, grid_rows),
        in_specs=[
            smem,                                              # folded weights (flat)
            smem,                                              # folded bias (flat)
            pl.BlockSpec((1, C, ts, LANE), lambda b, i: (b, 0, i, 0)),
        ],
        out_specs=pl.BlockSpec((1, C, ts, LANE), lambda b, i: (b, 0, i, 0)),
        compiler_params=pltpu.CompilerParams(
            dimension_semantics=("parallel", "parallel")),
    )(w_flat, bias_flat, x)

    out = out.reshape(B, C, rows * LANE)
    if pad:
        out = out[:, :, :HW]
    return out.reshape(B, C, H, W)


def reference(x_nchw, sigma, ctx_c, ctx_u, cond_scale, params, skip_uncond=False):
    """Pure-JAX reference for correctness checking (unfused math)."""
    B, C, H, W = x_nchw.shape
    x = jnp.transpose(x_nchw.astype(jnp.float32), (0, 2, 3, 1)).reshape(B, H * W, C)
    s = sigma.reshape(B, 1, 1).astype(jnp.float32)
    xc = x * jax.lax.rsqrt(s * s + 1.0)

    def eps(ctx):
        h = xc @ params["w_conv"] + params["b_conv"]
        cm = jnp.mean(ctx.astype(jnp.float32), axis=1)               # (B, Dctx)
        h = h + (cm @ params["w_ctx"] + params["b_ctx"])[:, None, :]
        h = h + s * params["w_t"][None, :, :]
        return h

    denom = jnp.float32(1.0) + jnp.float32(1e-37)
    cond_pred = (x - eps(ctx_c) * s) / denom
    uncond_pred = ((x - eps(ctx_u) * s) / denom) * (0.0 if skip_uncond else 1.0)
    out = uncond_pred + (cond_pred - uncond_pred) * cond_scale
    return jnp.transpose(out.reshape(B, H, W, C), (0, 3, 1, 2))


if __name__ == "__main__":
    key = jax.random.PRNGKey(0)
    B, C, H, W = 2, 4, 16, 16
    S, Dctx = 8, 32
    ks = jax.random.split(key, 8)

    x = jax.random.normal(ks[0], (B, C, H, W), jnp.float32)
    sigma = jnp.array([14.6146, 7.0], jnp.float32)           # per-sample sigma
    ctx_cond = jax.random.normal(ks[1], (B, S, Dctx), jnp.float32)
    ctx_uncond = jax.random.normal(ks[2], (B, S, Dctx), jnp.float32)

    # deterministic synthetic diffusion-model parameters
    params = {
        "w_conv": 0.1 * jax.random.normal(ks[3], (C, C), jnp.float32),
        "b_conv": 0.01 * jax.random.normal(ks[4], (1, C), jnp.float32),
        "w_ctx": 0.1 * jax.random.normal(ks[5], (Dctx, C), jnp.float32),
        "b_ctx": 0.01 * jax.random.normal(ks[6], (1, C), jnp.float32),
        "w_t": 0.01 * jax.random.normal(ks[7], (1, C), jnp.float32),
    }
    cond_scale = 7.5

    # general CFG path (f32 I/O)
    out = jax.block_until_ready(
        cfg_noise_predictor(x, sigma, ctx_cond, ctx_uncond, cond_scale, params))
    ref = reference(x, sigma, ctx_cond, ctx_uncond, cond_scale, params)
    assert out.shape == (B, C, H, W), out.shape
    assert out.dtype == x.dtype, out.dtype
    assert jnp.allclose(out, ref, atol=1e-4, rtol=1e-4), float(
        jnp.max(jnp.abs(out - ref)))

    # cfg==1 (skip-uncond) trace-time specialization
    out1 = jax.block_until_ready(
        cfg_noise_predictor(x, sigma, ctx_cond, ctx_uncond, 1.0, params))
    ref1 = reference(x, sigma, ctx_cond, ctx_uncond, 1.0, params, skip_uncond=True)
    assert jnp.allclose(out1, ref1, atol=1e-4, rtol=1e-4), float(
        jnp.max(jnp.abs(out1 - ref1)))

    # bf16 I/O path (native-dtype HBM traffic, f32 in-register accumulation)
    out_bf = jax.block_until_ready(
        cfg_noise_predictor(x.astype(jnp.bfloat16), sigma, ctx_cond, ctx_uncond,
                            cond_scale, params))
    assert out_bf.dtype == jnp.bfloat16 and out_bf.shape == (B, C, H, W)
    assert bool(jnp.all(jnp.isfinite(out_bf.astype(jnp.float32))))
    assert jnp.allclose(out_bf.astype(jnp.float32), ref, atol=0.5, rtol=0.05), float(
        jnp.max(jnp.abs(out_bf.astype(jnp.float32) - ref)))

    print("KERNEL_OK")
</pallas_src>

<mosaic_0001>
module attributes {stable_mosaic.version = 11 : i64} {
  func.func @cfg_kernel(%arg0: i32, %arg1: i32, %arg2: memref<32xf32, #tpu.memory_space<smem>>, %arg3: memref<8xf32, #tpu.memory_space<smem>>, %arg4: memref<1x4x2x128xf32, #tpu.memory_space<vmem>>, %arg5: memref<1x4x2x128xf32, #tpu.memory_space<vmem>>) attributes {dimension_semantics = [#tpu.dimension_semantics<parallel>, #tpu.dimension_semantics<parallel>], iteration_bounds = array<i64: 2, 1>, scalar_prefetch = 0 : i64, scratch_operands = 0 : i64, tpu.core_type = #tpu.core_type<tc>, window_params = [{transform_indices = @transform_0, window_bounds = array<i64: 32>}, {transform_indices = @transform_1, window_bounds = array<i64: 8>}, {transform_indices = @transform_2, window_bounds = array<i64: 1, 4, 2, 128>}, {transform_indices = @transform_3, window_bounds = array<i64: 1, 4, 2, 128>}]} {
    %c0 = arith.constant 0 : index
    %c0_0 = arith.constant 0 : index
    %c0_1 = arith.constant 0 : index
    %c0_2 = arith.constant 0 : index
    %0 = vector.load %arg4[%c0, %c0_0, %c0_1, %c0_2] : memref<1x4x2x128xf32, #tpu.memory_space<vmem>>, vector<1x1x2x128xf32>
    %1 = vector.shape_cast %0 : vector<1x1x2x128xf32> to vector<2x128xf32>
    %c4_i32 = arith.constant 4 : i32
    %2 = arith.muli %arg0, %c4_i32 : i32
    %c4_i32_3 = arith.constant 4 : i32
    %3 = arith.muli %2, %c4_i32_3 : i32
    %c0_i32 = arith.constant 0 : i32
    %4 = arith.addi %3, %c0_i32 : i32
    %5 = arith.index_cast %4 : i32 to index
    %6 = memref.load %arg2[%5] : memref<32xf32, #tpu.memory_space<smem>>
    %7 = vector.broadcast %6 : f32 to vector<2x128xf32>
    %8 = arith.mulf %1, %7 : vector<2x128xf32>
    %c0_4 = arith.constant 0 : index
    %c1 = arith.constant 1 : index
    %c0_5 = arith.constant 0 : index
    %c0_6 = arith.constant 0 : index
    %9 = vector.load %arg4[%c0_4, %c1, %c0_5, %c0_6] : memref<1x4x2x128xf32, #tpu.memory_space<vmem>>, vector<1x1x2x128xf32>
    %10 = vector.shape_cast %9 : vector<1x1x2x128xf32> to vector<2x128xf32>
    %c4_i32_7 = arith.constant 4 : i32
    %11 = arith.muli %arg0, %c4_i32_7 : i32
    %c4_i32_8 = arith.constant 4 : i32
    %12 = arith.muli %11, %c4_i32_8 : i32
    %c4_i32_9 = arith.constant 4 : i32
    %13 = arith.addi %12, %c4_i32_9 : i32
    %c0_i32_10 = arith.constant 0 : i32
    %14 = arith.addi %13, %c0_i32_10 : i32
    %15 = arith.index_cast %14 : i32 to index
    %16 = memref.load %arg2[%15] : memref<32xf32, #tpu.memory_space<smem>>
    %17 = vector.broadcast %16 : f32 to vector<2x128xf32>
    %18 = arith.mulf %10, %17 : vector<2x128xf32>
    %19 = arith.addf %8, %18 : vector<2x128xf32>
    %c0_11 = arith.constant 0 : index
    %c2 = arith.constant 2 : index
    %c0_12 = arith.constant 0 : index
    %c0_13 = arith.constant 0 : index
    %20 = vector.load %arg4[%c0_11, %c2, %c0_12, %c0_13] : memref<1x4x2x128xf32, #tpu.memory_space<vmem>>, vector<1x1x2x128xf32>
    %21 = vector.shape_cast %20 : vector<1x1x2x128xf32> to vector<2x128xf32>
    %c4_i32_14 = arith.constant 4 : i32
    %22 = arith.muli %arg0, %c4_i32_14 : i32
    %c4_i32_15 = arith.constant 4 : i32
    %23 = arith.muli %22, %c4_i32_15 : i32
    %c8_i32 = arith.constant 8 : i32
    %24 = arith.addi %23, %c8_i32 : i32
    %c0_i32_16 = arith.constant 0 : i32
    %25 = arith.addi %24, %c0_i32_16 : i32
    %26 = arith.index_cast %25 : i32 to index
    %27 = memref.load %arg2[%26] : memref<32xf32, #tpu.memory_space<smem>>
    %28 = vector.broadcast %27 : f32 to vector<2x128xf32>
    %29 = arith.mulf %21, %28 : vector<2x128xf32>
    %30 = arith.addf %19, %29 : vector<2x128xf32>
    %c0_17 = arith.constant 0 : index
    %c3 = arith.constant 3 : index
    %c0_18 = arith.constant 0 : index
    %c0_19 = arith.constant 0 : index
    %31 = vector.load %arg4[%c0_17, %c3, %c0_18, %c0_19] : memref<1x4x2x128xf32, #tpu.memory_space<vmem>>, vector<1x1x2x128xf32>
    %32 = vector.shape_cast %31 : vector<1x1x2x128xf32> to vector<2x128xf32>
    %c4_i32_20 = arith.constant 4 : i32
    %33 = arith.muli %arg0, %c4_i32_20 : i32
    %c4_i32_21 = arith.constant 4 : i32
    %34 = arith.muli %33, %c4_i32_21 : i32
    %c12_i32 = arith.constant 12 : i32
    %35 = arith.addi %34, %c12_i32 : i32
    %c0_i32_22 = arith.constant 0 : i32
    %36 = arith.addi %35, %c0_i32_22 : i32
    %37 = arith.index_cast %36 : i32 to index
    %38 = memref.load %arg2[%37] : memref<32xf32, #tpu.memory_space<smem>>
    %39 = vector.broadcast %38 : f32 to vector<2x128xf32>
    %40 = arith.mulf %32, %39 : vector<2x128xf32>
    %41 = arith.addf %30, %40 : vector<2x128xf32>
    %c4_i32_23 = arith.constant 4 : i32
    %42 = arith.muli %arg0, %c4_i32_23 : i32
    %c0_i32_24 = arith.constant 0 : i32
    %43 = arith.addi %42, %c0_i32_24 : i32
    %44 = arith.index_cast %43 : i32 to index
    %45 = memref.load %arg3[%44] : memref<8xf32, #tpu.memory_space<smem>>
    %46 = vector.broadcast %45 : f32 to vector<2x128xf32>
    %47 = arith.addf %41, %46 : vector<2x128xf32>
    %c0_25 = arith.constant 0 : index
    %c0_26 = arith.constant 0 : index
    %c0_27 = arith.constant 0 : index
    %c0_28 = arith.constant 0 : index
    %48 = vector.load %arg5[%c0_25, %c0_26, %c0_27, %c0_28] : memref<1x4x2x128xf32, #tpu.memory_space<vmem>>, vector<1x1x2x128xf32>
    %49 = vector.shape_cast %48 : vector<1x1x2x128xf32> to vector<2x128xf32>
    %50 = vector.shape_cast %47 : vector<2x128xf32> to vector<1x1x2x128xf32>
    tpu.vector_store %arg5[%c0_25, %c0_26, %c0_27, %c0_28], %50 {strides = array<i32>} : memref<1x4x2x128xf32, #tpu.memory_space<vmem>>, vector<1x1x2x128xf32>,
    %c0_29 = arith.constant 0 : index
    %c0_30 = arith.constant 0 : index
    %c0_31 = arith.constant 0 : index
    %c0_32 = arith.constant 0 : index
    %51 = vector.load %arg4[%c0_29, %c0_30, %c0_31, %c0_32] : memref<1x4x2x128xf32, #tpu.memory_space<vmem>>, vector<1x1x2x128xf32>
    %52 = vector.shape_cast %51 : vector<1x1x2x128xf32> to vector<2x128xf32>
    %c4_i32_33 = arith.constant 4 : i32
    %53 = arith.muli %arg0, %c4_i32_33 : i32
    %c4_i32_34 = arith.constant 4 : i32
    %54 = arith.muli %53, %c4_i32_34 : i32
    %c1_i32 = arith.constant 1 : i32
    %55 = arith.addi %54, %c1_i32 : i32
    %56 = arith.index_cast %55 : i32 to index
    %57 = memref.load %arg2[%56] : memref<32xf32, #tpu.memory_space<smem>>
    %58 = vector.broadcast %57 : f32 to vector<2x128xf32>
    %59 = arith.mulf %52, %58 : vector<2x128xf32>
    %c0_35 = arith.constant 0 : index
    %c1_36 = arith.constant 1 : index
    %c0_37 = arith.constant 0 : index
    %c0_38 = arith.constant 0 : index
    %60 = vector.load %arg4[%c0_35, %c1_36, %c0_37, %c0_38] : memref<1x4x2x128xf32, #tpu.memory_space<vmem>>, vector<1x1x2x128xf32>
    %61 = vector.shape_cast %60 : vector<1x1x2x128xf32> to vector<2x128xf32>
    %c4_i32_39 = arith.constant 4 : i32
    %62 = arith.muli %arg0, %c4_i32_39 : i32
    %c4_i32_40 = arith.constant 4 : i32
    %63 = arith.muli %62, %c4_i32_40 : i32
    %c4_i32_41 = arith.constant 4 : i32
    %64 = arith.addi %63, %c4_i32_41 : i32
    %c1_i32_42 = arith.constant 1 : i32
    %65 = arith.addi %64, %c1_i32_42 : i32
    %66 = arith.index_cast %65 : i32 to index
    %67 = memref.load %arg2[%66] : memref<32xf32, #tpu.memory_space<smem>>
    %68 = vector.broadcast %67 : f32 to vector<2x128xf32>
    %69 = arith.mulf %61, %68 : vector<2x128xf32>
    %70 = arith.addf %59, %69 : vector<2x128xf32>
    %c0_43 = arith.constant 0 : index
    %c2_44 = arith.constant 2 : index
    %c0_45 = arith.constant 0 : index
    %c0_46 = arith.constant 0 : index
    %71 = vector.load %arg4[%c0_43, %c2_44, %c0_45, %c0_46] : memref<1x4x2x128xf32, #tpu.memory_space<vmem>>, vector<1x1x2x128xf32>
    %72 = vector.shape_cast %71 : vector<1x1x2x128xf32> to vector<2x128xf32>
    %c4_i32_47 = arith.constant 4 : i32
    %73 = arith.muli %arg0, %c4_i32_47 : i32
    %c4_i32_48 = arith.constant 4 : i32
    %74 = arith.muli %73, %c4_i32_48 : i32
    %c8_i32_49 = arith.constant 8 : i32
    %75 = arith.addi %74, %c8_i32_49 : i32
    %c1_i32_50 = arith.constant 1 : i32
    %76 = arith.addi %75, %c1_i32_50 : i32
    %77 = arith.index_cast %76 : i32 to index
    %78 = memref.load %arg2[%77] : memref<32xf32, #tpu.memory_space<smem>>
    %79 = vector.broadcast %78 : f32 to vector<2x128xf32>
    %80 = arith.mulf %72, %79 : vector<2x128xf32>
    %81 = arith.addf %70, %80 : vector<2x128xf32>
    %c0_51 = arith.constant 0 : index
    %c3_52 = arith.constant 3 : index
    %c0_53 = arith.constant 0 : index
    %c0_54 = arith.constant 0 : index
    %82 = vector.load %arg4[%c0_51, %c3_52, %c0_53, %c0_54] : memref<1x4x2x128xf32, #tpu.memory_space<vmem>>, vector<1x1x2x128xf32>
    %83 = vector.shape_cast %82 : vector<1x1x2x128xf32> to vector<2x128xf32>
    %c4_i32_55 = arith.constant 4 : i32
    %84 = arith.muli %arg0, %c4_i32_55 : i32
    %c4_i32_56 = arith.constant 4 : i32
    %85 = arith.muli %84, %c4_i32_56 : i32
    %c12_i32_57 = arith.constant 12 : i32
    %86 = arith.addi %85, %c12_i32_57 : i32
    %c1_i32_58 = arith.constant 1 : i32
    %87 = arith.addi %86, %c1_i32_58 : i32
    %88 = arith.index_cast %87 : i32 to index
    %89 = memref.load %arg2[%88] : memref<32xf32, #tpu.memory_space<smem>>
    %90 = vector.broadcast %89 : f32 to vector<2x128xf32>
    %91 = arith.mulf %83, %90 : vector<2x128xf32>
    %92 = arith.addf %81, %91 : vector<2x128xf32>
    %c4_i32_59 = arith.constant 4 : i32
    %93 = arith.muli %arg0, %c4_i32_59 : i32
    %c1_i32_60 = arith.constant 1 : i32
    %94 = arith.addi %93, %c1_i32_60 : i32
    %95 = arith.index_cast %94 : i32 to index
    %96 = memref.load %arg3[%95] : memref<8xf32, #tpu.memory_space<smem>>
    %97 = vector.broadcast %96 : f32 to vector<2x128xf32>
    %98 = arith.addf %92, %97 : vector<2x128xf32>
    %c0_61 = arith.constant 0 : index
    %c1_62 = arith.constant 1 : index
    %c0_63 = arith.constant 0 : index
    %c0_64 = arith.constant 0 : index
    %99 = vector.load %arg5[%c0_61, %c1_62, %c0_63, %c0_64] : memref<1x4x2x128xf32, #tpu.memory_space<vmem>>, vector<1x1x2x128xf32>
    %100 = vector.shape_cast %99 : vector<1x1x2x128xf32> to vector<2x128xf32>
    %101 = vector.shape_cast %98 : vector<2x128xf32> to vector<1x1x2x128xf32>
    tpu.vector_store %arg5[%c0_61, %c1_62, %c0_63, %c0_64], %101 {strides = array<i32>} : memref<1x4x2x128xf32, #tpu.memory_space<vmem>>, vector<1x1x2x128xf32>,
    %c0_65 = arith.constant 0 : index
    %c0_66 = arith.constant 0 : index
    %c0_67 = arith.constant 0 : index
    %c0_68 = arith.constant 0 : index
    %102 = vector.load %arg4[%c0_65, %c0_66, %c0_67, %c0_68] : memref<1x4x2x128xf32, #tpu.memory_space<vmem>>, vector<1x1x2x128xf32>
    %103 = vector.shape_cast %102 : vector<1x1x2x128xf32> to vector<2x128xf32>
    %c4_i32_69 = arith.constant 4 : i32
    %104 = arith.muli %arg0, %c4_i32_69 : i32
    %c4_i32_70 = arith.constant 4 : i32
    %105 = arith.muli %104, %c4_i32_70 : i32
    %c2_i32 = arith.constant 2 : i32
    %106 = arith.addi %105, %c2_i32 : i32
    %107 = arith.index_cast %106 : i32 to index
    %108 = memref.load %arg2[%107] : memref<32xf32, #tpu.memory_space<smem>>
    %109 = vector.broadcast %108 : f32 to vector<2x128xf32>
    %110 = arith.mulf %103, %109 : vector<2x128xf32>
    %c0_71 = arith.constant 0 : index
    %c1_72 = arith.constant 1 : index
    %c0_73 = arith.constant 0 : index
    %c0_74 = arith.constant 0 : index
    %111 = vector.load %arg4[%c0_71, %c1_72, %c0_73, %c0_74] : memref<1x4x2x128xf32, #tpu.memory_space<vmem>>, vector<1x1x2x128xf32>
    %112 = vector.shape_cast %111 : vector<1x1x2x128xf32> to vector<2x128xf32>
    %c4_i32_75 = arith.constant 4 : i32
    %113 = arith.muli %arg0, %c4_i32_75 : i32
    %c4_i32_76 = arith.constant 4 : i32
    %114 = arith.muli %113, %c4_i32_76 : i32
    %c4_i32_77 = arith.constant 4 : i32
    %115 = arith.addi %114, %c4_i32_77 : i32
    %c2_i32_78 = arith.constant 2 : i32
    %116 = arith.addi %115, %c2_i32_78 : i32
    %117 = arith.index_cast %116 : i32 to index
    %118 = memref.load %arg2[%117] : memref<32xf32, #tpu.memory_space<smem>>
    %119 = vector.broadcast %118 : f32 to vector<2x128xf32>
    %120 = arith.mulf %112, %119 : vector<2x128xf32>
    %121 = arith.addf %110, %120 : vector<2x128xf32>
    %c0_79 = arith.constant 0 : index
    %c2_80 = arith.constant 2 : index
    %c0_81 = arith.constant 0 : index
    %c0_82 = arith.constant 0 : index
    %122 = vector.load %arg4[%c0_79, %c2_80, %c0_81, %c0_82] : memref<1x4x2x128xf32, #tpu.memory_space<vmem>>, vector<1x1x2x128xf32>
    %123 = vector.shape_cast %122 : vector<1x1x2x128xf32> to vector<2x128xf32>
    %c4_i32_83 = arith.constant 4 : i32
    %124 = arith.muli %arg0, %c4_i32_83 : i32
    %c4_i32_84 = arith.constant 4 : i32
    %125 = arith.muli %124, %c4_i32_84 : i32
    %c8_i32_85 = arith.constant 8 : i32
    %126 = arith.addi %125, %c8_i32_85 : i32
    %c2_i32_86 = arith.constant 2 : i32
    %127 = arith.addi %126, %c2_i32_86 : i32
    %128 = arith.index_cast %127 : i32 to index
    %129 = memref.load %arg2[%128] : memref<32xf32, #tpu.memory_space<smem>>
    %130 = vector.broadcast %129 : f32 to vector<2x128xf32>
    %131 = arith.mulf %123, %130 : vector<2x128xf32>
    %132 = arith.addf %121, %131 : vector<2x128xf32>
    %c0_87 = arith.constant 0 : index
    %c3_88 = arith.constant 3 : index
    %c0_89 = arith.constant 0 : index
    %c0_90 = arith.constant 0 : index
    %133 = vector.load %arg4[%c0_87, %c3_88, %c0_89, %c0_90] : memref<1x4x2x128xf32, #tpu.memory_space<vmem>>, vector<1x1x2x128xf32>
    %134 = vector.shape_cast %133 : vector<1x1x2x128xf32> to vector<2x128xf32>
    %c4_i32_91 = arith.constant 4 : i32
    %135 = arith.muli %arg0, %c4_i32_91 : i32
    %c4_i32_92 = arith.constant 4 : i32
    %136 = arith.muli %135, %c4_i32_92 : i32
    %c12_i32_93 = arith.constant 12 : i32
    %137 = arith.addi %136, %c12_i32_93 : i32
    %c2_i32_94 = arith.constant 2 : i32
    %138 = arith.addi %137, %c2_i32_94 : i32
    %139 = arith.index_cast %138 : i32 to index
    %140 = memref.load %arg2[%139] : memref<32xf32, #tpu.memory_space<smem>>
    %141 = vector.broadcast %140 : f32 to vector<2x128xf32>
    %142 = arith.mulf %134, %141 : vector<2x128xf32>
    %143 = arith.addf %132, %142 : vector<2x128xf32>
    %c4_i32_95 = arith.constant 4 : i32
    %144 = arith.muli %arg0, %c4_i32_95 : i32
    %c2_i32_96 = arith.constant 2 : i32
    %145 = arith.addi %144, %c2_i32_96 : i32
    %146 = arith.index_cast %145 : i32 to index
    %147 = memref.load %arg3[%146] : memref<8xf32, #tpu.memory_space<smem>>
    %148 = vector.broadcast %147 : f32 to vector<2x128xf32>
    %149 = arith.addf %143, %148 : vector<2x128xf32>
    %c0_97 = arith.constant 0 : index
    %c2_98 = arith.constant 2 : index
    %c0_99 = arith.constant 0 : index
    %c0_100 = arith.constant 0 : index
    %150 = vector.load %arg5[%c0_97, %c2_98, %c0_99, %c0_100] : memref<1x4x2x128xf32, #tpu.memory_space<vmem>>, vector<1x1x2x128xf32>
    %151 = vector.shape_cast %150 : vector<1x1x2x128xf32> to vector<2x128xf32>
    %152 = vector.shape_cast %149 : vector<2x128xf32> to vector<1x1x2x128xf32>
    tpu.vector_store %arg5[%c0_97, %c2_98, %c0_99, %c0_100], %152 {strides = array<i32>} : memref<1x4x2x128xf32, #tpu.memory_space<vmem>>, vector<1x1x2x128xf32>,
    %c0_101 = arith.constant 0 : index
    %c0_102 = arith.constant 0 : index
    %c0_103 = arith.constant 0 : index
    %c0_104 = arith.constant 0 : index
    %153 = vector.load %arg4[%c0_101, %c0_102, %c0_103, %c0_104] : memref<1x4x2x128xf32, #tpu.memory_space<vmem>>, vector<1x1x2x128xf32>
    %154 = vector.shape_cast %153 : vector<1x1x2x128xf32> to vector<2x128xf32>
    %c4_i32_105 = arith.constant 4 : i32
    %155 = arith.muli %arg0, %c4_i32_105 : i32
    %c4_i32_106 = arith.constant 4 : i32
    %156 = arith.muli %155, %c4_i32_106 : i32
    %c3_i32 = arith.constant 3 : i32
    %157 = arith.addi %156, %c3_i32 : i32
    %158 = arith.index_cast %157 : i32 to index
    %159 = memref.load %arg2[%158] : memref<32xf32, #tpu.memory_space<smem>>
    %160 = vector.broadcast %159 : f32 to vector<2x128xf32>
    %161 = arith.mulf %154, %160 : vector<2x128xf32>
    %c0_107 = arith.constant 0 : index
    %c1_108 = arith.constant 1 : index
    %c0_109 = arith.constant 0 : index
    %c0_110 = arith.constant 0 : index
    %162 = vector.load %arg4[%c0_107, %c1_108, %c0_109, %c0_110] : memref<1x4x2x128xf32, #tpu.memory_space<vmem>>, vector<1x1x2x128xf32>
    %163 = vector.shape_cast %162 : vector<1x1x2x128xf32> to vector<2x128xf32>
    %c4_i32_111 = arith.constant 4 : i32
    %164 = arith.muli %arg0, %c4_i32_111 : i32
    %c4_i32_112 = arith.constant 4 : i32
    %165 = arith.muli %164, %c4_i32_112 : i32
    %c4_i32_113 = arith.constant 4 : i32
    %166 = arith.addi %165, %c4_i32_113 : i32
    %c3_i32_114 = arith.constant 3 : i32
    %167 = arith.addi %166, %c3_i32_114 : i32
    %168 = arith.index_cast %167 : i32 to index
    %169 = memref.load %arg2[%168] : memref<32xf32, #tpu.memory_space<smem>>
    %170 = vector.broadcast %169 : f32 to vector<2x128xf32>
    %171 = arith.mulf %163, %170 : vector<2x128xf32>
    %172 = arith.addf %161, %171 : vector<2x128xf32>
    %c0_115 = arith.constant 0 : index
    %c2_116 = arith.constant 2 : index
    %c0_117 = arith.constant 0 : index
    %c0_118 = arith.constant 0 : index
    %173 = vector.load %arg4[%c0_115, %c2_116, %c0_117, %c0_118] : memref<1x4x2x128xf32, #tpu.memory_space<vmem>>, vector<1x1x2x128xf32>
    %174 = vector.shape_cast %173 : vector<1x1x2x128xf32> to vector<2x128xf32>
    %c4_i32_119 = arith.constant 4 : i32
    %175 = arith.muli %arg0, %c4_i32_119 : i32
    %c4_i32_120 = arith.constant 4 : i32
    %176 = arith.muli %175, %c4_i32_120 : i32
    %c8_i32_121 = arith.constant 8 : i32
    %177 = arith.addi %176, %c8_i32_121 : i32
    %c3_i32_122 = arith.constant 3 : i32
    %178 = arith.addi %177, %c3_i32_122 : i32
    %179 = arith.index_cast %178 : i32 to index
    %180 = memref.load %arg2[%179] : memref<32xf32, #tpu.memory_space<smem>>
    %181 = vector.broadcast %180 : f32 to vector<2x128xf32>
    %182 = arith.mulf %174, %181 : vector<2x128xf32>
    %183 = arith.addf %172, %182 : vector<2x128xf32>
    %c0_123 = arith.constant 0 : index
    %c3_124 = arith.constant 3 : index
    %c0_125 = arith.constant 0 : index
    %c0_126 = arith.constant 0 : index
    %184 = vector.load %arg4[%c0_123, %c3_124, %c0_125, %c0_126] : memref<1x4x2x128xf32, #tpu.memory_space<vmem>>, vector<1x1x2x128xf32>
    %185 = vector.shape_cast %184 : vector<1x1x2x128xf32> to vector<2x128xf32>
    %c4_i32_127 = arith.constant 4 : i32
    %186 = arith.muli %arg0, %c4_i32_127 : i32
    %c4_i32_128 = arith.constant 4 : i32
    %187 = arith.muli %186, %c4_i32_128 : i32
    %c12_i32_129 = arith.constant 12 : i32
    %188 = arith.addi %187, %c12_i32_129 : i32
    %c3_i32_130 = arith.constant 3 : i32
    %189 = arith.addi %188, %c3_i32_130 : i32
    %190 = arith.index_cast %189 : i32 to index
    %191 = memref.load %arg2[%190] : memref<32xf32, #tpu.memory_space<smem>>
    %192 = vector.broadcast %191 : f32 to vector<2x128xf32>
    %193 = arith.mulf %185, %192 : vector<2x128xf32>
    %194 = arith.addf %183, %193 : vector<2x128xf32>
    %c4_i32_131 = arith.constant 4 : i32
    %195 = arith.muli %arg0, %c4_i32_131 : i32
    %c3_i32_132 = arith.constant 3 : i32
    %196 = arith.addi %195, %c3_i32_132 : i32
    %197 = arith.index_cast %196 : i32 to index
    %198 = memref.load %arg3[%197] : memref<8xf32, #tpu.memory_space<smem>>
    %199 = vector.broadcast %198 : f32 to vector<2x128xf32>
    %200 = arith.addf %194, %199 : vector<2x128xf32>
    %c0_133 = arith.constant 0 : index
    %c3_134 = arith.constant 3 : index
    %c0_135 = arith.constant 0 : index
    %c0_136 = arith.constant 0 : index
    %201 = vector.load %arg5[%c0_133, %c3_134, %c0_135, %c0_136] : memref<1x4x2x128xf32, #tpu.memory_space<vmem>>, vector<1x1x2x128xf32>
    %202 = vector.shape_cast %201 : vector<1x1x2x128xf32> to vector<2x128xf32>
    %203 = vector.shape_cast %200 : vector<2x128xf32> to vector<1x1x2x128xf32>
    tpu.vector_store %arg5[%c0_133, %c3_134, %c0_135, %c0_136], %203 {strides = array<i32>} : memref<1x4x2x128xf32, #tpu.memory_space<vmem>>, vector<1x1x2x128xf32>,
    return
  }
  func.func @transform_0(%arg0: i32, %arg1: i32) -> i32 {
    %c0_i32 = arith.constant 0 : i32
    %c0_i32_0 = arith.constant 0 : i32
    return %c0_i32 : i32
  }
  func.func @transform_1(%arg0: i32, %arg1: i32) -> i32 {
    %c0_i32 = arith.constant 0 : i32
    %c0_i32_0 = arith.constant 0 : i32
    return %c0_i32 : i32
  }
  func.func @transform_2(%arg0: i32, %arg1: i32) -> (i32, i32, i32, i32) {
    %c0_i32 = arith.constant 0 : i32
    %c0_i32_0 = arith.constant 0 : i32
    %c0_i32_1 = arith.constant 0 : i32
    return %arg0, %c0_i32, %arg1, %c0_i32_0 : i32, i32, i32, i32
  }
  func.func @transform_3(%arg0: i32, %arg1: i32) -> (i32, i32, i32, i32) {
    %c0_i32 = arith.constant 0 : i32
    %c0_i32_0 = arith.constant 0 : i32
    %c0_i32_1 = arith.constant 0 : i32
    return %arg0, %c0_i32, %arg1, %c0_i32_0 : i32, i32, i32, i32
  }
}

</mosaic_0001>

<llo_original>
// kernel: tpu_custom_call.1
$region0: #{tpu_custom_call.1}
  #allocation0 [shape = 'u32[]', space=smem, size = 0x4, offset = 0x4, fixed_abs, tag = 'smem constant byte address 0x4 - core index']
  #allocation1 [shape = 'u32[144,128]{1,0:T(1,128)}', space=vmem, size = 0x12000, scoped, tag = 'internal scratch']
  %s0 = inlined_call_operand.hbm [shape: f32[32], index: 0, kind: input, shape index: {}]
  %s1 = inlined_call_operand.vmem [shape: f32[8], index: 1, kind: input, shape index: {}]
  %s2 = inlined_call_operand.hbm [shape: f32[2,4,2,128], index: 2, kind: input, shape index: {}]
  %s3 = inlined_call_operand.hbm [shape: f32[2,4,2,128], index: 3, kind: output, shape index: {}]
  %s4 = sld [smem:[#allocation0]]
  $region57: #{tpu_custom_call.1} parent=0
    _
  %s6 = ssub.s32 1, %s4
  %s7 = scalar_select 0, %s6, %s4
  $region1: #{tpu_custom_call.1} parent=0
    #allocation2 [shape = 'u8[512]{0}', space=smem, size = 0x200, scoped, tag = 'input window, operand 0, single buffered']
    #allocation3 [shape = 's32[2]{0}', space=sflag, size = 0x8, scoped, tag = 'scoped memory for tpu_custom_call.1']
    #allocation4 [shape = 's32[2]{0}', space=sflag, size = 0x8, scoped, tag = 'scoped memory for tpu_custom_call.1']
    #allocation5 [shape = 's32[2]{0}', space=sflag, size = 0x8, scoped, tag = 'scoped memory for tpu_custom_call.1']
    #allocation6 [shape = 's32[2]{0}', space=sflag, size = 0x8, scoped, tag = 'scoped memory for tpu_custom_call.1']
    #allocation7 [shape = 'u8[512]{0}', space=smem, size = 0x200, scoped, tag = 'input window, operand 1, single buffered']
    #allocation8 [shape = 'u8[8192]{0}', space=vmem, size = 0x2000, scoped, tag = 'input window, operand 2']
    #allocation9 [shape = 'u8[8192]{0}', space=vmem, size = 0x2000, scoped, tag = 'output window, operand 0']
    %8 = vsyncpa [#allocation5], 0
    %9 = vsyncpa [#allocation6], 0
    %10 = vsyncpa [#allocation3], 0
    %s11 = scalar_lea.sflag [#allocation3], 1
    %12 = vsyncpa %s11, 0
    %13 = vsyncpa [#allocation4], 0
    %s14 = scalar_lea.sflag [#allocation4], 1
    %15 = vsyncpa %s14, 0
    loop: start=0, step=1, limit=4
    $region2: #{tpu_custom_call.1} parent=1 // loop_pre_header
      _
    $region3: #{tpu_custom_call.1} parent=1 // loop_header
      %s17 = sphi 0, %s21
      %p18 = scmp.ge.s32.totalorder %s17, 4
      %s24 = sphi 0, %s36
      %s25 = sphi 0, %s32
      %s26 = sphi 0, %s24
      %s27 = sphi 0, %s25
      %s28 = sphi 0, %s26
      %s29 = sphi 0, %s27
      %s37 = sphi 0, %s37
      %s39 = sphi 0, %s37
      %s40 = sphi 0, %s39
      %s54 = sphi 0, %s40
      %s58 = sphi 0, %s58
      %s60 = sphi 0, %s58
      %s61 = sphi 0, %s60
      %s75 = sphi 0, %s61
      %s83 = sphi 0, %s85
      %s86 = sphi 0, %s83
      %s87 = sphi 0, %s86
      %s103 = sphi 0, %s87
      %s111 = sphi 0, %s113
      %s114 = sphi 0, %s111
      %s115 = sphi 0, %s114
      %s131 = sphi 0, %s115
    $region4: #{tpu_custom_call.1} parent=1 // loop_header_branch
      %20 = sbr.rel (%p18) target = $region8
    $region5: #{tpu_custom_call.1} parent=1 // loop_body
      %s22 = ssub.s32 %s17, 1
      %s23 = ssub.s32 %s17, 2
      %s30 = sadd.s32 1, %s25
      %p31 = scmp.ge.s32.totalorder %s30, 1
      %s32 = scalar_select %p31, 0, %s30
      %s33 = sadd.s32 1, %s24
      %s34 = scalar_select %p31, %s33, %s24
      %p35 = scmp.ge.s32.totalorder %s34, 2
      %s36 = scalar_select %p35, 0, %s34
      %s38 = sadd.s32 %s37, 1
      %p41 = scmp.eq.s32.totalorder %s17, 1
      %p42 = scmp.ne.s32.totalorder %s37, %s39
      %p43 = scmp.eq.s32.totalorder %s17, 0
      %p44 = por %p42, %p43
      %p45 = scmp.ne.s32.totalorder %s37, %s39
      %p46 = scmp.eq.s32.totalorder %s22, 1
      %p47 = por %p45, %p46
      %p48 = scmp.ne.s32.totalorder %s39, %s40
      %p49 = scmp.eq.s32.totalorder %s22, 0
      %p50 = por %p48, %p49
      %p51 = scmp.ne.s32.totalorder %s39, %s40
      %p52 = scmp.eq.s32.totalorder %s23, 1
      %p53 = por %p51, %p52
      %p55 = scmp.ne.s32.totalorder %s40, %s54
      %p56 = scmp.eq.s32.totalorder %s23, 0
      %p57 = por %p55, %p56
      %s59 = sadd.s32 %s58, 1
      %p62 = scmp.eq.s32.totalorder %s17, 1
      %p63 = scmp.ne.s32.totalorder %s58, %s60
      %p64 = scmp.eq.s32.totalorder %s17, 0
      %p65 = por %p63, %p64
      %p66 = scmp.ne.s32.totalorder %s58, %s60
      %p67 = scmp.eq.s32.totalorder %s22, 1
      %p68 = por %p66, %p67
      %p69 = scmp.ne.s32.totalorder %s60, %s61
      %p70 = scmp.eq.s32.totalorder %s22, 0
      %p71 = por %p69, %p70
      %p72 = scmp.ne.s32.totalorder %s60, %s61
      %p73 = scmp.eq.s32.totalorder %s23, 1
      %p74 = por %p72, %p73
      %p76 = scmp.ne.s32.totalorder %s61, %s75
      %p77 = scmp.eq.s32.totalorder %s23, 0
      %p78 = por %p76, %p77
      %s79 = ssub.s32 %s24, %s36
      %s80 = ssub.s32 %s25, %s32
      %s81 = sor.u32 %s79, %s80
      %p82 = scmp.eq.s32.totalorder %s81, 0
      %s84 = sadd.s32 %s83, 1
      %s85 = scalar_select %p82, %s83, %s84
      %p88 = pneg %p82
      %p89 = scmp.eq.s32.totalorder %s17, 1
      %p90 = por %p88, %p89
      %p91 = scmp.ne.s32.totalorder %s83, %s86
      %p92 = scmp.eq.s32.totalorder %s17, 0
      %p93 = por %p91, %p92
      %p94 = scmp.ne.s32.totalorder %s83, %s86
      %p95 = scmp.eq.s32.totalorder %s22, 1
      %p96 = por %p94, %p95
      %p97 = scmp.ne.s32.totalorder %s86, %s87
      %p98 = scmp.eq.s32.totalorder %s22, 0
      %p99 = por %p97, %p98
      %p100 = scmp.ne.s32.totalorder %s86, %s87
      %p101 = scmp.eq.s32.totalorder %s23, 1
      %p102 = por %p100, %p101
      %p104 = scmp.ne.s32.totalorder %s87, %s103
      %p105 = scmp.eq.s32.totalorder %s23, 0
      %p106 = por %p104, %p105
      %s107 = ssub.s32 %s24, %s36
      %s108 = ssub.s32 %s25, %s32
      %s109 = sor.u32 %s107, %s108
      %p110 = scmp.eq.s32.totalorder %s109, 0
      %s112 = sadd.s32 %s111, 1
      %s113 = scalar_select %p110, %s111, %s112
      %p116 = pneg %p110
      %p117 = scmp.eq.s32.totalorder %s17, 1
      %p118 = por %p116, %p117
      %p119 = scmp.ne.s32.totalorder %s111, %s114
      %p120 = scmp.eq.s32.totalorder %s17, 0
      %p121 = por %p119, %p120
      %p122 = scmp.ne.s32.totalorder %s111, %s114
      %p123 = scmp.eq.s32.totalorder %s22, 1
      %p124 = por %p122, %p123
      %p125 = scmp.ne.s32.totalorder %s114, %s115
      %p126 = scmp.eq.s32.totalorder %s22, 0
      %p127 = por %p125, %p126
      %p128 = scmp.ne.s32.totalorder %s114, %s115
      %p129 = scmp.eq.s32.totalorder %s23, 1
      %p130 = por %p128, %p129
      %p132 = scmp.ne.s32.totalorder %s115, %s131
      %p133 = scmp.eq.s32.totalorder %s23, 0
      %p134 = por %p132, %p133
      %p135 = scmp.le.s32.totalorder 1, %s17
      %p136 = scmp.lt.s32.totalorder %s17, 3
      %p137 = pnand %p135, %p136
      %p138 = pneg %p137
      // Predicated region
      $region9: #{tpu_custom_call.1} parent=5 // pred_check
        _
      $region10: #{tpu_custom_call.1} parent=5 // pred_check_branch
        %140 = sbr.rel (%p137) target = $region12
      $region11: #{tpu_custom_call.1} parent=5 // pred_region
        %s141 = ssub.s32 %s17, 1
        // Predicated region
        $region13: #{tpu_custom_call.1} parent=11 // pred_check
          %p142 = pneg %p50
        $region14: #{tpu_custom_call.1} parent=11 // pred_check_branch
          %144 = sbr.rel (%p142) target = $region16
        $region15: #{tpu_custom_call.1} parent=11 // pred_region
          %s146 = ssub.s32 16, 16
          %147 = vsyncadd [#allocation5], %s146
          %150 = dma.hbm_to_smem %s0, 16, [#allocation2], [#allocation5]
        $region16: #{tpu_custom_call.1} parent=11 // pred_fallthru
          _
        // Predicated region
        $region17: #{tpu_custom_call.1} parent=11 // pred_check
          %p151 = pneg %p71
        $region18: #{tpu_custom_call.1} parent=11 // pred_check_branch
          %153 = sbr.rel (%p151) target = $region20
        $region19: #{tpu_custom_call.1} parent=11 // pred_region
          %s155 = ssub.s32 16, 16
          %156 = vsyncadd [#allocation6], %s155
          %s158 = sshll.u32 %s1, 4
          %s159 = int_to_ptr.vmem [resolvable:$true] %s158
          %161 = dma.vmem_to_smem %s159, 16, [#allocation7], [#allocation6]
        $region20: #{tpu_custom_call.1} parent=11 // pred_fallthru
          _
      $region12: #{tpu_custom_call.1} parent=5 // pred_fallthru
        _
      %p162 = scmp.lt.s32.totalorder %s17, 2
      // Predicated region
      $region21: #{tpu_custom_call.1} parent=5 // pred_check
        %p163 = pneg %p162
      $region22: #{tpu_custom_call.1} parent=5 // pred_check_branch
        %165 = sbr.rel (%p163) target = $region24
      $region23: #{tpu_custom_call.1} parent=5 // pred_region
        // Predicated region
        $region25: #{tpu_custom_call.1} parent=23 // pred_check
          %p166 = pneg %p93
        $region26: #{tpu_custom_call.1} parent=23 // pred_check_branch
          %168 = sbr.rel (%p166) target = $region28
        $region27: #{tpu_custom_call.1} parent=23 // pred_region
          %s169 = sand.u32 %s83, 1
          %s170 = scalar_lea.sflag [#allocation3], %s169
          %s171 = sand.u32 %s83, 1
          %s172 = smul.addr %s171, 8
          %s173 = scalar_lea.vmem [#allocation8], %s172
          %s175 = ssub.s32 128, 128
          %176 = vsyncadd %s170, %s175
          %s177 = smul.addr %s24, 4
          %s178 = sadd.s32 %s25, %s177
          %s179 = smul.addr %s178, 32
          %s180 = scalar_lea.hbm %s2, %s179
          %s181 = sshll.u32 %s173, 4
          %s182 = int_to_ptr.vmem [resolvable:$true] %s181
          %187 = dma.hbm_to_vmem [thread:$0]  %s180, 128, %s182, %s170, 32, 32, 2
        $region28: #{tpu_custom_call.1} parent=23 // pred_fallthru
          _
      $region24: #{tpu_custom_call.1} parent=5 // pred_fallthru
        _
      %p188 = scmp.le.s32.totalorder 1, %s17
      %p189 = scmp.lt.s32.totalorder %s17, 3
      %p190 = pnand %p188, %p189
      %p191 = pneg %p190
      // Predicated region
      $region29: #{tpu_custom_call.1} parent=5 // pred_check
        _
      $region30: #{tpu_custom_call.1} parent=5 // pred_check_branch
        %193 = sbr.rel (%p190) target = $region32
      $region31: #{tpu_custom_call.1} parent=5 // pred_region
        %s194 = ssub.s32 %s17, 1
        // Predicated region
        $region33: #{tpu_custom_call.1} parent=31 // pred_check
          %p195 = pneg %p50
        $region34: #{tpu_custom_call.1} parent=31 // pred_check_branch
          %197 = sbr.rel (%p195) target = $region36
        $region35: #{tpu_custom_call.1} parent=31 // pred_region
          %198 = dma.done [#allocation5], 16
        $region36: #{tpu_custom_call.1} parent=31 // pred_fallthru
          _
        // Predicated region
        $region37: #{tpu_custom_call.1} parent=31 // pred_check
          %p199 = pneg %p71
        $region38: #{tpu_custom_call.1} parent=31 // pred_check_branch
          %201 = sbr.rel (%p199) target = $region40
        $region39: #{tpu_custom_call.1} parent=31 // pred_region
          %202 = dma.done [#allocation6], 16
        $region40: #{tpu_custom_call.1} parent=31 // pred_fallthru
          _
        %s203 = sand.u32 %s86, 1
        %s204 = scalar_lea.sflag [#allocation3], %s203
        %s205 = sand.u32 %s86, 1
        %s206 = smul.addr %s205, 8
        %s207 = scalar_lea.vmem [#allocation8], %s206
        // Predicated region
        $region41: #{tpu_custom_call.1} parent=31 // pred_check
          %p208 = pneg %p99
        $region42: #{tpu_custom_call.1} parent=31 // pred_check_branch
          %210 = sbr.rel (%p208) target = $region44
        $region43: #{tpu_custom_call.1} parent=31 // pred_region
          %211 = dma.done %s204, 128
        $region44: #{tpu_custom_call.1} parent=31 // pred_fallthru
          _
        %212 = sfence
        %p213 = pneg %p50
        %p214 = pneg %p47
        %p215 = pneg %p71
        %p216 = pneg %p68
        %s217 = sand.u32 %s86, 1
        %s218 = scalar_lea.sflag [#allocation3], %s217
        %s219 = sand.u32 %s86, 1
        %s220 = smul.addr %s219, 8
        %s221 = scalar_lea.vmem [#allocation8], %s220
        %p222 = pneg %p99
        %p223 = pneg %p96
        %p224 = pneg %p127
        %p225 = pneg %p124
        %s226 = sand.u32 %s114, 1
        %s227 = scalar_lea.sflag [#allocation4], %s226
        %s228 = sand.u32 %s114, 1
        %s229 = smul.addr %s228, 8
        %s230 = scalar_lea.vmem [#allocation9], %s229
        %v231 = vld [vmem:[%s207] sm:$0x3]
        %s232 = smul.u32 %s26, 16
        %s233 = sld [smem:[#allocation2 + %s232]]
        %v234 = vstv %s233
        %v235 = vmul.f32 %v231, %v234
        %s236 = scalar_lea.vmem %s207, 2 [#allocation8]
        %v237 = vld [vmem:[%s236] sm:$0x3]
        %s238 = sadd.s32 %s232, 4
        %s239 = sld [smem:[#allocation2 + %s238]]
        %v240 = vstv %s239
        %v241 = vmul.f32 %v237, %v240
        %v242 = vadd.f32 %v235, %v241
        %s243 = scalar_lea.vmem %s207, 4 [#allocation8]
        %v244 = vld [vmem:[%s243] sm:$0x3]
        %s245 = sadd.s32 %s232, 8
        %s246 = sld [smem:[#allocation2 + %s245]]
        %v247 = vstv %s246
        %v248 = vmul.f32 %v244, %v247
        %v249 = vadd.f32 %v242, %v248
        %s250 = scalar_lea.vmem %s207, 6 [#allocation8]
        %v251 = vld [vmem:[%s250] sm:$0x3]
        %s252 = sadd.s32 %s232, 12
        %s253 = sld [smem:[#allocation2 + %s252]]
        %v254 = vstv %s253
        %v255 = vmul.f32 %v251, %v254
        %v256 = vadd.f32 %v249, %v255
        %s257 = smul.u32 %s26, 4
        %s258 = sld [smem:[#allocation7 + %s257]]
        %v259 = vstv %s258
        %v260 = vadd.f32 %v256, %v259
        %261 = vst [vmem:[%s230] sm:$0x3] %v260
        %v262 = vld [vmem:[%s207] sm:$0x3]
        %s263 = sadd.s32 %s232, 1
        %s264 = sld [smem:[#allocation2 + %s263]]
        %v265 = vstv %s264
        %v266 = vmul.f32 %v262, %v265
        %v267 = vld [vmem:[%s236] sm:$0x3]
        %s268 = sadd.s32 %s232, 5
        %s269 = sld [smem:[#allocation2 + %s268]]
        %v270 = vstv %s269
        %v271 = vmul.f32 %v267, %v270
        %v272 = vadd.f32 %v266, %v271
        %v273 = vld [vmem:[%s243] sm:$0x3]
        %s274 = sadd.s32 %s232, 9
        %s275 = sld [smem:[#allocation2 + %s274]]
        %v276 = vstv %s275
        %v277 = vmul.f32 %v273, %v276
        %v278 = vadd.f32 %v272, %v277
        %v279 = vld [vmem:[%s250] sm:$0x3]
        %s280 = sadd.s32 %s232, 13
        %s281 = sld [smem:[#allocation2 + %s280]]
        %v282 = vstv %s281
        %v283 = vmul.f32 %v279, %v282
        %v284 = vadd.f32 %v278, %v283
        %s285 = sadd.s32 %s257, 1
        %s286 = sld [smem:[#allocation7 + %s285]]
        %v287 = vstv %s286
        %v288 = vadd.f32 %v284, %v287
        %s289 = scalar_lea.vmem %s230, 2 [#allocation9]
        %290 = vst [vmem:[%s289] sm:$0x3] %v288
        %v291 = vld [vmem:[%s207] sm:$0x3]
        %s292 = sadd.s32 %s232, 2
        %s293 = sld [smem:[#allocation2 + %s292]]
        %v294 = vstv %s293
        %v295 = vmul.f32 %v291, %v294
        %v296 = vld [vmem:[%s236] sm:$0x3]
        %s297 = sadd.s32 %s232, 6
        %s298 = sld [smem:[#allocation2 + %s297]]
        %v299 = vstv %s298
        %v300 = vmul.f32 %v296, %v299
        %v301 = vadd.f32 %v295, %v300
        %v302 = vld [vmem:[%s243] sm:$0x3]
        %s303 = sadd.s32 %s232, 10
        %s304 = sld [smem:[#allocation2 + %s303]]
        %v305 = vstv %s304
        %v306 = vmul.f32 %v302, %v305
        %v307 = vadd.f32 %v301, %v306
        %v308 = vld [vmem:[%s250] sm:$0x3]
        %s309 = sadd.s32 %s232, 14
        %s310 = sld [smem:[#allocation2 + %s309]]
        %v311 = vstv %s310
        %v312 = vmul.f32 %v308, %v311
        %v313 = vadd.f32 %v307, %v312
        %s314 = sadd.s32 %s257, 2
        %s315 = sld [smem:[#allocation7 + %s314]]
        %v316 = vstv %s315
        %v317 = vadd.f32 %v313, %v316
        %s318 = scalar_lea.vmem %s230, 4 [#allocation9]
        %319 = vst [vmem:[%s318] sm:$0x3] %v317
        %v320 = vld [vmem:[%s207] sm:$0x3]
        %s321 = sadd.s32 %s232, 3
        %s322 = sld [smem:[#allocation2 + %s321]]
        %v323 = vstv %s322
        %v324 = vmul.f32 %v320, %v323
        %v325 = vld [vmem:[%s236] sm:$0x3]
        %s326 = sadd.s32 %s232, 7
        %s327 = sld [smem:[#allocation2 + %s326]]
        %v328 = vstv %s327
        %v329 = vmul.f32 %v325, %v328
        %v330 = vadd.f32 %v324, %v329
        %v331 = vld [vmem:[%s243] sm:$0x3]
        %s332 = sadd.s32 %s232, 11
        %s333 = sld [smem:[#allocation2 + %s332]]
        %v334 = vstv %s333
        %v335 = vmul.f32 %v331, %v334
        %v336 = vadd.f32 %v330, %v335
        %v337 = vld [vmem:[%s250] sm:$0x3]
        %s338 = sadd.s32 %s232, 15
        %s339 = sld [smem:[#allocation2 + %s338]]
        %v340 = vstv %s339
        %v341 = vmul.f32 %v337, %v340
        %v342 = vadd.f32 %v336, %v341
        %s343 = sadd.s32 %s257, 3
        %s344 = sld [smem:[#allocation7 + %s343]]
        %v345 = vstv %s344
        %v346 = vadd.f32 %v342, %v345
        %s347 = scalar_lea.vmem %s230, 6 [#allocation9]
        %348 = vst [vmem:[%s347] sm:$0x3] %v346
        %s349 = sand.u32 %s114, 1
        %s350 = scalar_lea.sflag [#allocation4], %s349
        %s351 = sand.u32 %s114, 1
        %s352 = smul.addr %s351, 8
        %s353 = scalar_lea.vmem [#allocation9], %s352
        // Predicated region
        $region45: #{tpu_custom_call.1} parent=31 // pred_check
          %p354 = pneg %p124
        $region46: #{tpu_custom_call.1} parent=31 // pred_check_branch
          %356 = sbr.rel (%p354) target = $region48
        $region47: #{tpu_custom_call.1} parent=31 // pred_region
          %s358 = ssub.s32 128, 128
          %359 = vsyncadd %s350, %s358
          %s360 = smul.addr %s26, 4
          %s361 = sadd.s32 %s27, %s360
          %s362 = smul.addr %s361, 32
          %s363 = scalar_lea.hbm %s3, %s362
          %s364 = sshll.u32 %s353, 4
          %s365 = int_to_ptr.vmem [resolvable:$true] %s364
          %370 = dma.vmem_to_hbm [thread:$0]  %s365, 128, %s363, %s350, 32, 32, 2
        $region48: #{tpu_custom_call.1} parent=31 // pred_fallthru
          _
      $region32: #{tpu_custom_call.1} parent=5 // pred_fallthru
        _
      %p371 = scmp.le.s32.totalorder 2, %s17
      // Predicated region
      $region49: #{tpu_custom_call.1} parent=5 // pred_check
        %p372 = pneg %p371
      $region50: #{tpu_custom_call.1} parent=5 // pred_check_branch
        %374 = sbr.rel (%p372) target = $region52
      $region51: #{tpu_custom_call.1} parent=5 // pred_region
        %s375 = ssub.s32 %s17, 2
        // Predicated region
        $region53: #{tpu_custom_call.1} parent=51 // pred_check
          %p376 = pneg %p130
        $region54: #{tpu_custom_call.1} parent=51 // pred_check_branch
          %378 = sbr.rel (%p376) target = $region56
        $region55: #{tpu_custom_call.1} parent=51 // pred_region
          %s379 = sand.u32 %s115, 1
          %s380 = scalar_lea.sflag [#allocation4], %s379
          %s381 = sand.u32 %s115, 1
          %s382 = smul.addr %s381, 8
          %s383 = scalar_lea.vmem [#allocation9], %s382
          %384 = dma.done %s380, 128
        $region56: #{tpu_custom_call.1} parent=51 // pred_fallthru
          _
      $region52: #{tpu_custom_call.1} parent=5 // pred_fallthru
        _
    $region6: #{tpu_custom_call.1} parent=1 // loop_footer
      %s21 = sadd.s32 1, %s17
    $region7: #{tpu_custom_call.1} parent=1 // loop_footer_branch
      %16 = sbr.rel target = $region3
    $region8: #{tpu_custom_call.1} parent=1 // loop_exit
      _
    %385 = vsyncpa [#allocation3], 1
    %s386 = scalar_lea.sflag [#allocation3], 1
    %387 = vsyncpa %s386, 1
    %388 = vsyncpa [#allocation4], 1
    %s389 = scalar_lea.sflag [#allocation4], 1
    %390 = vsyncpa %s389, 1
    %391 = vsyncpa [#allocation5], 1
    %s392 = scalar_lea.sflag [#allocation5], 1
    %393 = vsyncpa %s392, 1
    %394 = vsyncpa [#allocation6], 1
    %s395 = scalar_lea.sflag [#allocation6], 1
    %396 = vsyncpa %s395, 1

</llo_original>
